<compile_context>
chip_gen: v7x
topology: tpu7x:2x2x1
jax: 0.10.0
libtpu: 0.0.40
codegen_flags: <defaults>
</compile_context>

<pallas_src>
import jax
import jax.numpy as jnp
from jax.experimental import pallas as pl
from jax.experimental.pallas import tpu as pltpu

IN_FEATURES = 10
OUT_FEATURES = 5


def _round_up(x: int, m: int) -> int:
    return ((x + m - 1) // m) * m


def _linear_kernel(x_ref, w_ref, b_ref, o_ref):
    # Lane-dense layout: the batch tile is the lane (last) dim everywhere.
    #   x (IN, TB), w (OUT, IN), b (OUT, 1), o (OUT, TB)
    # The MXU only sees padding on the tiny M/K dims; N=TB streams lane-dense.
    acc = jnp.dot(w_ref[...], x_ref[...], preferred_element_type=jnp.float32)
    o_ref[...] = (acc + b_ref[...]).astype(o_ref.dtype)


def _pallas_linear_lane_dense(x_t, w, b, *, block_b: int):
    """x_t: (10, B) f32, w: (5, 10) f32, b: (5,) f32 -> (5, B) f32."""
    _, B = x_t.shape

    if B <= block_b:
        tb = B                           # single full-extent block: always legal
    else:
        tb = _round_up(block_b, 128)     # lane dim must be a multiple of 128

    grid = (pl.cdiv(B, tb),)             # ragged tail handled by partial blocks

    cost = pl.CostEstimate(
        flops=2 * B * IN_FEATURES * OUT_FEATURES,
        transcendentals=0,
        bytes_accessed=4 * (B * IN_FEATURES
                            + IN_FEATURES * OUT_FEATURES
                            + OUT_FEATURES
                            + B * OUT_FEATURES),
    )

    return pl.pallas_call(
        _linear_kernel,
        out_shape=jax.ShapeDtypeStruct((OUT_FEATURES, B), x_t.dtype),
        grid_spec=pltpu.PrefetchScalarGridSpec(
            num_scalar_prefetch=0,
            grid=grid,
            in_specs=[
                pl.BlockSpec((IN_FEATURES, tb), lambda i: (0, i)),
                pl.BlockSpec((OUT_FEATURES, IN_FEATURES), lambda i: (0, 0)),
                pl.BlockSpec((OUT_FEATURES, 1), lambda i: (0, 0)),
            ],
            out_specs=pl.BlockSpec((OUT_FEATURES, tb), lambda i: (0, i)),
        ),
        compiler_params=pltpu.CompilerParams(
            dimension_semantics=("parallel",),
            vmem_limit_bytes=32 * 1024 * 1024,  # safe on v5e/v6e/v7x; ~6 MiB used
        ),
        cost_estimate=cost,
    )(x_t, w, b.reshape(OUT_FEATURES, 1))


def simple_net_forward(x, w, b, *, block_b: int = 32768, min_pallas_rows: int = 49152):
    """SimpleNet.forward: x (B, 10) -> (B, 5), identical to nn.Linear(10, 5).

    Small batches (< min_pallas_rows) are left to XLA to fuse (a standalone
    custom call is pure launch/pipeline overhead there).  Pass
    min_pallas_rows=0 to force the Pallas path.
    """
    B = x.shape[0]
    if B < min_pallas_rows:
        return x @ w.T + b
    # TODO(synk): emit x as (10, B) / consume out as (5, B) upstream so these
    # transposes fuse into the producer/consumer instead of being copies.
    out_t = _pallas_linear_lane_dense(x.T, w, b, block_b=block_b)
    return out_t.T


def init_params(key):
    # Deterministic init mimicking torch.nn.Linear defaults:
    # weight ~ U(-k, k) with shape (out, in), bias ~ U(-k, k), k = 1/sqrt(in).
    kw, kb = jax.random.split(key)
    k = 1.0 / jnp.sqrt(jnp.float32(IN_FEATURES))
    w = jax.random.uniform(kw, (OUT_FEATURES, IN_FEATURES), jnp.float32, -k, k)
    b = jax.random.uniform(kb, (OUT_FEATURES,), jnp.float32, -k, k)
    return w, b


if __name__ == "__main__":
    key = jax.random.PRNGKey(0)
    kx, kp, kx2 = jax.random.split(key, 3)

    w, b = init_params(kp)

    # Small demo batch (typical SimpleNet input); force the Pallas path so the
    # kernel is actually exercised.
    batch = 2
    x = jax.random.normal(kx, (batch, IN_FEATURES), jnp.float32)
    out = jax.block_until_ready(simple_net_forward(x, w, b, min_pallas_rows=0))
    ref = x @ w.T + b
    assert out.shape == (batch, OUT_FEATURES)
    assert jnp.allclose(out, ref, atol=1e-5, rtol=1e-5)

    # Multi-step grid with a ragged tail (300 % 128 != 0) — exercises the
    # partial-block masking path with no wrapper-side pad/slice copies.
    batch2 = 300
    x2 = jax.random.normal(kx2, (batch2, IN_FEATURES), jnp.float32)
    out2 = jax.block_until_ready(
        simple_net_forward(x2, w, b, block_b=128, min_pallas_rows=0))
    ref2 = x2 @ w.T + b
    assert out2.shape == (batch2, OUT_FEATURES)
    assert jnp.allclose(out2, ref2, atol=1e-5, rtol=1e-5)

    # Default entry point for realistic tiny batches bypasses Pallas entirely
    # (XLA fuses the layer) and must agree numerically.
    out_fused = jax.block_until_ready(simple_net_forward(x, w, b))
    assert jnp.allclose(out_fused, ref, atol=1e-5, rtol=1e-5)

    print("KERNEL_OK")
</pallas_src>

<mosaic_0001>
module attributes {stable_mosaic.version = 11 : i64} {
  func.func @_linear_kernel(%arg0: i32, %arg1: memref<10x2xf32, #tpu.memory_space<vmem>>, %arg2: memref<5x10xf32, #tpu.memory_space<vmem>>, %arg3: memref<5x1xf32, #tpu.memory_space<vmem>>, %arg4: memref<5x2xf32, #tpu.memory_space<vmem>>) attributes {dimension_semantics = [#tpu.dimension_semantics<parallel>], iteration_bounds = array<i64: 1>, scalar_prefetch = 0 : i64, scratch_operands = 0 : i64, tpu.core_type = #tpu.core_type<tc>, window_params = [{transform_indices = @transform_0, window_bounds = array<i64: 10, 2>}, {pipeline_mode = #tpu.pipeline_mode<synchronous>, transform_indices = @transform_1, window_bounds = array<i64: 5, 10>}, {pipeline_mode = #tpu.pipeline_mode<synchronous>, transform_indices = @transform_2, window_bounds = array<i64: 5, 1>}, {transform_indices = @transform_3, window_bounds = array<i64: 5, 2>}]} {
    %c0 = arith.constant 0 : index
    %c0_0 = arith.constant 0 : index
    %0 = vector.load %arg2[%c0, %c0_0] : memref<5x10xf32, #tpu.memory_space<vmem>>, vector<5x10xf32>
    %c0_1 = arith.constant 0 : index
    %c0_2 = arith.constant 0 : index
    %1 = vector.load %arg1[%c0_1, %c0_2] : memref<10x2xf32, #tpu.memory_space<vmem>>, vector<10x2xf32>
    %cst = arith.constant dense<0.000000e+00> : vector<5x2xf32>
    %2 = tpu.matmul %0, %1, %cst {dimension_numbers = #tpu.dot_dimension_numbers<[1], [0], [0], [1], [0, 0, 1, 1], [], []>} : vector<5x10xf32>, vector<10x2xf32>, vector<5x2xf32> -> vector<5x2xf32>
    %c0_3 = arith.constant 0 : index
    %c0_4 = arith.constant 0 : index
    %3 = vector.load %arg3[%c0_3, %c0_4] : memref<5x1xf32, #tpu.memory_space<vmem>>, vector<5x1xf32>
    %4 = vector.broadcast %3 : vector<5x1xf32> to vector<5x2xf32>
    %5 = arith.addf %2, %4 : vector<5x2xf32>
    %c0_5 = arith.constant 0 : index
    %c0_6 = arith.constant 0 : index
    %6 = vector.load %arg4[%c0_5, %c0_6] : memref<5x2xf32, #tpu.memory_space<vmem>>, vector<5x2xf32>
    tpu.vector_store %arg4[%c0_5, %c0_6], %5 {strides = array<i32>} : memref<5x2xf32, #tpu.memory_space<vmem>>, vector<5x2xf32>,
    return
  }
  func.func @transform_0(%arg0: i32) -> (i32, i32) {
    %c0_i32 = arith.constant 0 : i32
    %c0_i32_0 = arith.constant 0 : i32
    return %c0_i32, %arg0 : i32, i32
  }
  func.func @transform_1(%arg0: i32) -> (i32, i32) {
    %c0_i32 = arith.constant 0 : i32
    %c0_i32_0 = arith.constant 0 : i32
    %c0_i32_1 = arith.constant 0 : i32
    return %c0_i32, %c0_i32_0 : i32, i32
  }
  func.func @transform_2(%arg0: i32) -> (i32, i32) {
    %c0_i32 = arith.constant 0 : i32
    %c0_i32_0 = arith.constant 0 : i32
    %c0_i32_1 = arith.constant 0 : i32
    return %c0_i32, %c0_i32_0 : i32, i32
  }
  func.func @transform_3(%arg0: i32) -> (i32, i32) {
    %c0_i32 = arith.constant 0 : i32
    %c0_i32_0 = arith.constant 0 : i32
    return %c0_i32, %arg0 : i32, i32
  }
}

</mosaic_0001>

<llo_original>
// kernel: tpu_custom_call.1
$region0: #{tpu_custom_call.1}
  #allocation0 [shape = 'u32[]', space=smem, size = 0x4, offset = 0x4, fixed_abs, tag = 'smem constant byte address 0x4 - core index']
  #allocation1 [shape = 'u32[144,128]{1,0:T(1,128)}', space=vmem, size = 0x12000, scoped, tag = 'internal scratch']
  %s0 = inlined_call_operand.vmem [shape: f32[10,2], index: 0, kind: input, shape index: {}]
  %s1 = inlined_call_operand.vmem [shape: f32[5,10], index: 1, kind: input, shape index: {}]
  %s2 = inlined_call_operand.vmem [shape: f32[5,1], index: 2, kind: input, shape index: {}]
  %s3 = inlined_call_operand.vmem [shape: f32[5,2], index: 3, kind: output, shape index: {}]
  %s4 = sld [smem:[#allocation0]]
  $region22: #{tpu_custom_call.1} parent=0
    _
  %s6 = ssub.s32 1, %s4
  %s7 = scalar_select 0, %s6, %s4
  // Predicated region
  $region2: #{tpu_custom_call.1} parent=0 // pred_check
    _
  $region3: #{tpu_custom_call.1} parent=0 // pred_check_branch
    %9 = sbr.rel (0) target = $region5
  $region4: #{tpu_custom_call.1} parent=0 // pred_region
    _
  $region5: #{tpu_custom_call.1} parent=0 // pred_fallthru
    _
  // Predicated region
  $region6: #{tpu_custom_call.1} parent=0 // pred_check
    _
  $region7: #{tpu_custom_call.1} parent=0 // pred_check_branch
    %11 = sbr.rel (0) target = $region9
  $region8: #{tpu_custom_call.1} parent=0 // pred_region
    _
  $region9: #{tpu_custom_call.1} parent=0 // pred_fallthru
    _
  // Predicated region
  $region10: #{tpu_custom_call.1} parent=0 // pred_check
    _
  $region11: #{tpu_custom_call.1} parent=0 // pred_check_branch
    %13 = sbr.rel (0) target = $region13
  $region12: #{tpu_custom_call.1} parent=0 // pred_region
    _
  $region13: #{tpu_custom_call.1} parent=0 // pred_fallthru
    _
  %v14 = vld [vmem:[%s1] sm:$0x1f]
  %v15 = vld [vmem:[%s0] sm:$0xff]
  %v16 = vld [vmem:[%s0 + $0x8] sm:$0x3]
  %v17 = vld [vmem:[%s2] sm:$0x1f]
  %19 = vset.pattern.permute.xlu0 0
  %20 = vperm.xlu0 %19, %v17
  %v21 = vpop.permute.xlu0 %20
  %vm23 = vcmask 80896
  %v25 = vsel %vm23, %v14, 0
  %vm27 = vcmask 1041408
  %v29 = vsel %vm27, %v16, 0
  %31 = vmatprep.subr.mxu0 0.0
  %32 = vmatpush1.msra.mxu0 %v15
  %33 = vmatprep.subr.mxu0 0.0
  %34 = vmatpush1.msra.mxu0 %v29
  %35 = vmatprep.subr.mxu0 0.0
  %36 = vmatpush1.msra.mxu0 0.0
  %37 = vmatprep.subr.mxu0 0.0
  %38 = vmatpush1.msra.mxu0 0.0
  %39 = vmatprep.subr.mxu0 0.0
  %40 = vmatpush1.msra.mxu0 0.0
  %41 = vmatprep.subr.mxu0 0.0
  %42 = vmatpush1.msra.mxu0 0.0
  %43 = vmatprep.subr.mxu0 0.0
  %44 = vmatpush1.msra.mxu0 0.0
  %45 = vmatprep.subr.mxu0 0.0
  %46 = vmatpush1.msra.mxu0 0.0
  %47 = vmatprep.subr.mxu0 0.0
  %48 = vmatpush1.msra.mxu0 0.0
  %49 = vmatprep.subr.mxu0 0.0
  %50 = vmatpush1.msra.mxu0 0.0
  %51 = vmatprep.subr.mxu0 0.0
  %52 = vmatpush1.msra.mxu0 0.0
  %53 = vmatprep.subr.mxu0 0.0
  %54 = vmatpush1.msra.mxu0 0.0
  %55 = vmatprep.subr.mxu0 0.0
  %56 = vmatpush1.msra.mxu0 0.0
  %57 = vmatprep.subr.mxu0 0.0
  %58 = vmatpush1.msra.mxu0 0.0
  %59 = vmatprep.subr.mxu0 0.0
  %60 = vmatpush1.msra.mxu0 0.0
  %61 = vmatprep.subr.mxu0 0.0
  %62 = vmatpush1.msra.mxu0 0.0
  %63 = vmatprep.subr.mxu0 0.0
  %64 = vmatpush1.msra.mxu0 0.0
  %65 = vmatprep.subr.mxu0 0.0
  %66 = vmatpush1.msra.mxu0 0.0
  %67 = vmatprep.subr.mxu0 0.0
  %68 = vmatpush1.msra.mxu0 0.0
  %69 = vmatprep.subr.mxu0 0.0
  %70 = vmatpush1.msra.mxu0 0.0
  %71 = vmatprep.subr.mxu0 0.0
  %72 = vmatpush1.msra.mxu0 0.0
  %73 = vmatprep.subr.mxu0 0.0
  %74 = vmatpush1.msra.mxu0 0.0
  %75 = vmatprep.subr.mxu0 0.0
  %76 = vmatpush1.msra.mxu0 0.0
  %77 = vmatprep.subr.mxu0 0.0
  %78 = vmatpush1.msra.mxu0 0.0
  %79 = vmatprep.subr.mxu0 0.0
  %80 = vmatpush1.msra.mxu0 0.0
  %81 = vmatprep.subr.mxu0 0.0
  %82 = vmatpush1.msra.mxu0 0.0
  %83 = vmatprep.subr.mxu0 0.0
  %84 = vmatpush1.msra.mxu0 0.0
  %85 = vmatprep.subr.mxu0 0.0
  %86 = vmatpush1.msra.mxu0 0.0
  %87 = vmatprep.subr.mxu0 0.0
  %88 = vmatpush1.msra.mxu0 0.0
  %89 = vmatprep.subr.mxu0 0.0
  %90 = vmatpush1.msra.mxu0 0.0
  %91 = vmatprep.subr.mxu0 0.0
  %92 = vmatpush1.msra.mxu0 0.0
  %93 = vmatprep.subr.mxu0 0.0
  %94 = vmatpush1.msra.mxu0 0.0
  %95 = vmatprep.mubr.f32.mxu0 0.0
  %96 = vmatmul.mubr.f32.gmra.mrb[0].mxu0 %v25
  %v97 = vpop.f32.mrb[0].mxu0
  %v98 = vadd.f32 %v21, %v97
  %v99 = vpop.f32.mrb[0].mxu0
  %100 = vdwg.mxu0
  %vm101 = vcmask 12288
  %102 = vst.msk [vmem:[%s3] sm:$0x1f] %vm101, %v98
  // Predicated region
  $region14: #{tpu_custom_call.1} parent=0 // pred_check
    _
  $region15: #{tpu_custom_call.1} parent=0 // pred_check_branch
    %104 = sbr.rel (0) target = $region17
  $region16: #{tpu_custom_call.1} parent=0 // pred_region
    _
  $region17: #{tpu_custom_call.1} parent=0 // pred_fallthru
    _
  // Predicated region
  $region18: #{tpu_custom_call.1} parent=0 // pred_check
    _
  $region19: #{tpu_custom_call.1} parent=0 // pred_check_branch
    %106 = sbr.rel (0) target = $region21
  $region20: #{tpu_custom_call.1} parent=0 // pred_region
    _
  $region21: #{tpu_custom_call.1} parent=0 // pred_fallthru
    _

</llo_original>
